<compile_context>
chip_gen: v5e
topology: v5e:2x2
jax: 0.10.0
libtpu: 0.0.40
codegen_flags: <defaults>
</compile_context>

<pallas_src>
import functools
from typing import NamedTuple

import jax
import jax.numpy as jnp
from jax.experimental import pallas as pl
from jax.experimental.pallas import tpu as pltpu


def _round_up(x, m):
    return (x + m - 1) // m * m


def _cdiv(a, b):
    return -(-a // b)


# ----------------------------------------------------------------------------- kernel
def actor_fwd_kernel(s_ref, w_ref, b_ref, o_ref, *, k1p, n_pad, n_layers, action_dim):
    """Fused MLP + tanh.

    s_ref : (tb, k1p) activation-I/O dtype (bf16 default), zero-padded lanes.
    w_ref : whole packed weight slab (VMEM-resident, single-buffered):
              rows [0, k1p)                     -> layer 0 weight (k1p  x n_pad)
              rows [k1p + (i-1)*n_pad, +n_pad)  -> layer i weight (n_pad x n_pad)
    b_ref : (n_layers, n_pad) f32 zero-padded biases (VMEM-resident).
    o_ref : (tb, action_dim) narrow output block.

    All accumulation and elementwise math (bias/ReLU/tanh) is f32; only the
    matmul LHS is cast to the weight storage dtype (bf16 by default).
    Row offsets into w_ref are multiples of 128 -> tile-aligned static slices.
    """
    f32 = jnp.float32
    x = s_ref[...].astype(f32)

    def dense(x, row0, rows, i):
        w = w_ref[row0:row0 + rows, :]
        y = jnp.dot(x.astype(w.dtype), w, preferred_element_type=f32)
        return y + b_ref[i].astype(f32)

    # layer 0
    x = jnp.maximum(dense(x, 0, k1p, 0), 0.0)
    off = k1p
    # hidden layers
    for i in range(1, n_layers - 1):
        x = jnp.maximum(dense(x, off, n_pad, i), 0.0)
        off += n_pad
    # output layer + tanh; narrow store -> only action_dim lanes hit HBM
    y = dense(x, off, n_pad, n_layers - 1)
    o_ref[...] = jnp.tanh(y[:, :action_dim]).astype(o_ref.dtype)


# ----------------------------------------------------------------------------- packing
class ActorMeta(NamedTuple):
    state_dim: int
    mid_dim: int
    action_dim: int
    k1p: int
    n_pad: int
    n_layers: int


def pack_actor_params(params, state_dim, mid_dim, action_dim,
                      weight_dtype=jnp.bfloat16):
    """Pack the 4 (W, b) pairs ONCE at init into one weight slab + one bias slab.

    Default storage is bf16 (halves weight HBM traffic / VMEM residency on all
    generations; biggest win on v7x's 64 MiB VMEM). Every layer output width is
    padded to n_pad (multiple of 128) and the input width to k1p (multiple of
    128), so all in-kernel weight slices are tile-aligned.
    """
    (w1, b1, w2, b2, w3, b3, w4, b4) = params
    n_pad = _round_up(max(mid_dim, action_dim), 128)
    k1p = _round_up(state_dim, 128)

    def pad_w(w, rows):
        out = jnp.zeros((rows, n_pad), weight_dtype)
        return out.at[:w.shape[0], :w.shape[1]].set(w.astype(weight_dtype))

    w_packed = jnp.concatenate(
        [pad_w(w1, k1p), pad_w(w2, n_pad), pad_w(w3, n_pad), pad_w(w4, n_pad)],
        axis=0)

    def pad_b(b):
        return jnp.zeros((n_pad,), jnp.float32).at[:b.shape[0]].set(b.astype(jnp.float32))

    b_packed = jnp.stack([pad_b(b1), pad_b(b2), pad_b(b3), pad_b(b4)], axis=0)

    meta = ActorMeta(state_dim, mid_dim, action_dim, k1p, n_pad, 4)
    return w_packed, b_packed, meta


# ----------------------------------------------------------------------------- wrapper
_SUBLANE = 16                              # bf16 sublane packing; also fine for f32
_VMEM_SOFT_BUDGET = 40 * 1024 * 1024       # headroom vs v7x's 64 MiB physical VMEM


def _choose_batch_tile(B):
    # Aim for >=2 grid steps once the batch is big enough (so v7x megacore actually
    # shards the batch over its 2 TensorCores); cap at 256 rows to bound VMEM.
    # v5e (128 MiB VMEM, lower HBM BW) callers may pass batch_tile=512 explicitly.
    tb = min(256, _round_up(_cdiv(B, 2), _SUBLANE))
    tb = max(tb, min(128, _round_up(B, _SUBLANE)))
    return tb


def actor_forward(s, w_packed, b_packed, *, meta, batch_tile=None,
                  io_dtype=jnp.bfloat16):
    """Fused Actor forward.

    Wrap with jax.jit(static_argnames=("meta", "batch_tile", "io_dtype")).
    Activation HBM I/O (padded state in, output out) uses io_dtype (bf16 default);
    all in-kernel math is f32. Pass an already-padded (B_pad, k1p) io_dtype state
    to skip the wrapper pad pass. For B<=8 single-state inference, batch several
    states per call (or fall back to plain XLA) — fixed launch/pad overhead
    dominates the ~5 KFLOP of useful work.
    """
    B = s.shape[0]
    k1p, n_pad = meta.k1p, meta.n_pad
    n_layers, action_dim = meta.n_layers, meta.action_dim

    tb = _choose_batch_tile(B) if batch_tile is None else _round_up(batch_tile, _SUBLANE)
    tb = min(tb, _round_up(B, _SUBLANE))

    # --- VMEM budgeting (v7x: 64 MiB physical, 32 MiB scoped default) ----------
    io_bytes = jnp.dtype(io_dtype).itemsize
    w_bytes = w_packed.size * w_packed.dtype.itemsize
    b_bytes = b_packed.size * b_packed.dtype.itemsize

    def vmem_estimate(t):
        in_tiles = 2 * t * k1p * io_bytes                  # double-buffered input blocks
        out_tiles = 2 * t * max(action_dim, 128) * io_bytes
        live_acts = 4 * t * n_pad * 4                      # f32 intermediates headroom
        return w_bytes + b_bytes + in_tiles + out_tiles + live_acts

    while tb > _SUBLANE and vmem_estimate(tb) > _VMEM_SOFT_BUDGET:
        tb = max(_SUBLANE, _round_up(tb // 2, _SUBLANE))
    # TODO(synk): if the weight slab alone exceeds ~24 MiB (very large mid_dim),
    # tile the weight rows with pltpu.emit_pipeline instead of keeping the whole
    # slab VMEM-resident.

    b_pad = _round_up(B, tb)
    vmem_limit = int(min(96 * 1024 * 1024,
                         max(32 * 1024 * 1024,
                             vmem_estimate(tb) + 8 * 1024 * 1024)))

    # --- state: pad to (b_pad, k1p) in io_dtype unless the caller pre-padded ---
    if s.shape == (b_pad, k1p) and s.dtype == jnp.dtype(io_dtype):
        s_p = s
    else:
        s_p = jnp.zeros((b_pad, k1p), io_dtype).at[:B, :s.shape[1]].set(
            s.astype(io_dtype))

    kernel = functools.partial(actor_fwd_kernel, k1p=k1p, n_pad=n_pad,
                               n_layers=n_layers, action_dim=action_dim)

    out = pl.pallas_call(
        kernel,
        out_shape=jax.ShapeDtypeStruct((b_pad, action_dim), io_dtype),
        grid_spec=pltpu.PrefetchScalarGridSpec(
            num_scalar_prefetch=0,
            grid=(b_pad // tb,),
            in_specs=[
                # batch-tiled padded state (pipelined / double-buffered)
                pl.BlockSpec((tb, k1p), lambda i: (i, 0)),
                # weights / biases: whole-array, single-buffered VMEM residents
                pl.BlockSpec(memory_space=pltpu.MemorySpace.VMEM),
                pl.BlockSpec(memory_space=pltpu.MemorySpace.VMEM),
            ],
            # narrow output: full last dim (= action_dim), no 128-lane padding
            out_specs=pl.BlockSpec((tb, action_dim), lambda i: (i, 0)),
        ),
        compiler_params=pltpu.CompilerParams(
            dimension_semantics=("parallel",),        # megacore batch sharding on v7x
            vmem_limit_bytes=vmem_limit),
    )(s_p, w_packed, b_packed)

    return out if b_pad == B else out[:B]


# ----------------------------------------------------------------------------- init / reference
def make_params(key, state_dim, mid_dim, action_dim):
    """Deterministic synthetic init (PyTorch-default-style uniform)."""
    dims = [(state_dim, mid_dim), (mid_dim, mid_dim),
            (mid_dim, mid_dim), (mid_dim, action_dim)]
    keys = jax.random.split(key, 2 * len(dims))
    params = []
    for j, (fan_in, fan_out) in enumerate(dims):
        bound = 1.0 / (fan_in ** 0.5)
        params.append(jax.random.uniform(keys[2 * j], (fan_in, fan_out),
                                         jnp.float32, -bound, bound))
        params.append(jax.random.uniform(keys[2 * j + 1], (fan_out,),
                                         jnp.float32, -bound, bound))
    return tuple(params)


def actor_forward_ref(s, params):
    """Pure-JAX reference mirroring the PyTorch Actor.forward."""
    (w1, b1, w2, b2, w3, b3, w4, b4) = params
    relu = lambda x: jnp.maximum(x, 0.0)
    h = relu(s @ w1 + b1)
    h = relu(h @ w2 + b2)
    h = relu(h @ w3 + b3)
    return jnp.tanh(h @ w4 + b4)


# ----------------------------------------------------------------------------- main
if __name__ == "__main__":
    # Small shapes; batch / state_dim / action_dim intentionally NOT multiples of
    # 8 / 128 so the padding paths are exercised.
    batch, state_dim, mid_dim, action_dim = 6, 12, 32, 5

    key = jax.random.PRNGKey(0)
    k_s, k_p = jax.random.split(key)
    s = jax.random.normal(k_s, (batch, state_dim), jnp.float32)
    params = make_params(k_p, state_dim, mid_dim, action_dim)
    ref = actor_forward_ref(s, params)

    fwd = jax.jit(actor_forward, static_argnames=("meta", "batch_tile", "io_dtype"))

    # 1) Default fast path: bf16 weights + bf16 activation I/O (f32 accumulate/math).
    w_bf16, b_bf16, meta = pack_actor_params(params, state_dim, mid_dim, action_dim)
    out = jax.block_until_ready(fwd(s, w_bf16, b_bf16, meta=meta))
    assert out.shape == (batch, action_dim)
    # bf16 storage of weights/activations -> looser tolerance than the f32 path.
    assert jnp.allclose(out.astype(jnp.float32), ref, atol=3e-2, rtol=3e-2), \
        "bf16 path mismatch vs. reference"

    # 2) Exactness path: f32 weights + f32 activation I/O.
    w_f32, b_f32, meta32 = pack_actor_params(params, state_dim, mid_dim, action_dim,
                                             weight_dtype=jnp.float32)
    out32 = jax.block_until_ready(fwd(s, w_f32, b_f32, meta=meta32,
                                      io_dtype=jnp.float32))
    assert out32.shape == (batch, action_dim)
    assert jnp.allclose(out32, ref, atol=1e-3, rtol=1e-3), \
        "f32 path mismatch vs. reference"

    # TODO(synk): Actor.get_action's stochastic noise path is not part of forward()
    # and stays host-side (jax.random) if needed.

    print("KERNEL_OK")
</pallas_src>

<mosaic_0001>
module attributes {stable_mosaic.version = 11 : i64} {
  func.func @actor_fwd_kernel(%arg0: i32, %arg1: memref<16x128xbf16, #tpu.memory_space<vmem>>, %arg2: memref<512x128xbf16, #tpu.memory_space<vmem>>, %arg3: memref<4x128xf32, #tpu.memory_space<vmem>>, %arg4: memref<16x5xbf16, #tpu.memory_space<vmem>>) attributes {dimension_semantics = [#tpu.dimension_semantics<parallel>], iteration_bounds = array<i64: 1>, scalar_prefetch = 0 : i64, scratch_operands = 0 : i64, tpu.core_type = #tpu.core_type<tc>, window_params = [{transform_indices = @transform_0, window_bounds = array<i64: 16, 128>}, {pipeline_mode = #tpu.pipeline_mode<synchronous>, transform_indices = @transform_1, window_bounds = array<i64: 512, 128>}, {pipeline_mode = #tpu.pipeline_mode<synchronous>, transform_indices = @transform_2, window_bounds = array<i64: 4, 128>}, {transform_indices = @transform_3, window_bounds = array<i64: 16, 5>}]} {
    %c0 = arith.constant 0 : index
    %c0_0 = arith.constant 0 : index
    %0 = vector.load %arg1[%c0, %c0_0] : memref<16x128xbf16, #tpu.memory_space<vmem>>, vector<16x128xbf16>
    %1 = arith.extf %0 : vector<16x128xbf16> to vector<16x128xf32>
    %c0_1 = arith.constant 0 : index
    %c0_2 = arith.constant 0 : index
    %2 = vector.load %arg2[%c0_1, %c0_2] : memref<512x128xbf16, #tpu.memory_space<vmem>>, vector<128x128xbf16>
    %3 = arith.truncf %1 : vector<16x128xf32> to vector<16x128xbf16>
    %cst = arith.constant dense<0.000000e+00> : vector<16x128xf32>
    %4 = tpu.matmul %3, %2, %cst {dimension_numbers = #tpu.dot_dimension_numbers<[1], [0], [0], [1], [0, 0, 1, 1], [], []>} : vector<16x128xbf16>, vector<128x128xbf16>, vector<16x128xf32> -> vector<16x128xf32>
    %c0_3 = arith.constant 0 : index
    %c0_4 = arith.constant 0 : index
    %5 = vector.load %arg3[%c0_3, %c0_4] : memref<4x128xf32, #tpu.memory_space<vmem>>, vector<1x128xf32>
    %6 = vector.shape_cast %5 : vector<1x128xf32> to vector<128xf32>
    %7 = vector.shape_cast %6 : vector<128xf32> to vector<1x128xf32>
    %8 = vector.broadcast %7 : vector<1x128xf32> to vector<16x128xf32>
    %9 = arith.addf %4, %8 : vector<16x128xf32>
    %cst_5 = arith.constant 0.000000e+00 : f32
    %10 = vector.broadcast %cst_5 : f32 to vector<16x128xf32>
    %11 = arith.maximumf %9, %10 : vector<16x128xf32>
    %c128 = arith.constant 128 : index
    %c0_6 = arith.constant 0 : index
    %12 = vector.load %arg2[%c128, %c0_6] : memref<512x128xbf16, #tpu.memory_space<vmem>>, vector<128x128xbf16>
    %13 = arith.truncf %11 : vector<16x128xf32> to vector<16x128xbf16>
    %cst_7 = arith.constant dense<0.000000e+00> : vector<16x128xf32>
    %14 = tpu.matmul %13, %12, %cst_7 {dimension_numbers = #tpu.dot_dimension_numbers<[1], [0], [0], [1], [0, 0, 1, 1], [], []>} : vector<16x128xbf16>, vector<128x128xbf16>, vector<16x128xf32> -> vector<16x128xf32>
    %c1 = arith.constant 1 : index
    %c0_8 = arith.constant 0 : index
    %15 = vector.load %arg3[%c1, %c0_8] : memref<4x128xf32, #tpu.memory_space<vmem>>, vector<1x128xf32>
    %16 = vector.shape_cast %15 : vector<1x128xf32> to vector<128xf32>
    %17 = vector.shape_cast %16 : vector<128xf32> to vector<1x128xf32>
    %18 = vector.broadcast %17 : vector<1x128xf32> to vector<16x128xf32>
    %19 = arith.addf %14, %18 : vector<16x128xf32>
    %cst_9 = arith.constant 0.000000e+00 : f32
    %20 = vector.broadcast %cst_9 : f32 to vector<16x128xf32>
    %21 = arith.maximumf %19, %20 : vector<16x128xf32>
    %c256 = arith.constant 256 : index
    %c0_10 = arith.constant 0 : index
    %22 = vector.load %arg2[%c256, %c0_10] : memref<512x128xbf16, #tpu.memory_space<vmem>>, vector<128x128xbf16>
    %23 = arith.truncf %21 : vector<16x128xf32> to vector<16x128xbf16>
    %cst_11 = arith.constant dense<0.000000e+00> : vector<16x128xf32>
    %24 = tpu.matmul %23, %22, %cst_11 {dimension_numbers = #tpu.dot_dimension_numbers<[1], [0], [0], [1], [0, 0, 1, 1], [], []>} : vector<16x128xbf16>, vector<128x128xbf16>, vector<16x128xf32> -> vector<16x128xf32>
    %c2 = arith.constant 2 : index
    %c0_12 = arith.constant 0 : index
    %25 = vector.load %arg3[%c2, %c0_12] : memref<4x128xf32, #tpu.memory_space<vmem>>, vector<1x128xf32>
    %26 = vector.shape_cast %25 : vector<1x128xf32> to vector<128xf32>
    %27 = vector.shape_cast %26 : vector<128xf32> to vector<1x128xf32>
    %28 = vector.broadcast %27 : vector<1x128xf32> to vector<16x128xf32>
    %29 = arith.addf %24, %28 : vector<16x128xf32>
    %cst_13 = arith.constant 0.000000e+00 : f32
    %30 = vector.broadcast %cst_13 : f32 to vector<16x128xf32>
    %31 = arith.maximumf %29, %30 : vector<16x128xf32>
    %c384 = arith.constant 384 : index
    %c0_14 = arith.constant 0 : index
    %32 = vector.load %arg2[%c384, %c0_14] : memref<512x128xbf16, #tpu.memory_space<vmem>>, vector<128x128xbf16>
    %33 = arith.truncf %31 : vector<16x128xf32> to vector<16x128xbf16>
    %cst_15 = arith.constant dense<0.000000e+00> : vector<16x128xf32>
    %34 = tpu.matmul %33, %32, %cst_15 {dimension_numbers = #tpu.dot_dimension_numbers<[1], [0], [0], [1], [0, 0, 1, 1], [], []>} : vector<16x128xbf16>, vector<128x128xbf16>, vector<16x128xf32> -> vector<16x128xf32>
    %c3 = arith.constant 3 : index
    %c0_16 = arith.constant 0 : index
    %35 = vector.load %arg3[%c3, %c0_16] : memref<4x128xf32, #tpu.memory_space<vmem>>, vector<1x128xf32>
    %36 = vector.shape_cast %35 : vector<1x128xf32> to vector<128xf32>
    %37 = vector.shape_cast %36 : vector<128xf32> to vector<1x128xf32>
    %38 = vector.broadcast %37 : vector<1x128xf32> to vector<16x128xf32>
    %39 = arith.addf %34, %38 : vector<16x128xf32>
    %40 = vector.extract_strided_slice %39 {offsets = [0, 0], sizes = [16, 5], strides = [1, 1]} : vector<16x128xf32> to vector<16x5xf32>
    %41 = math.tanh %40 : vector<16x5xf32>
    %42 = arith.truncf %41 : vector<16x5xf32> to vector<16x5xbf16>
    %c0_17 = arith.constant 0 : index
    %c0_18 = arith.constant 0 : index
    %43 = vector.load %arg4[%c0_17, %c0_18] : memref<16x5xbf16, #tpu.memory_space<vmem>>, vector<16x5xbf16>
    tpu.vector_store %arg4[%c0_17, %c0_18], %42 {strides = array<i32>} : memref<16x5xbf16, #tpu.memory_space<vmem>>, vector<16x5xbf16>,
    return
  }
  func.func @transform_0(%arg0: i32) -> (i32, i32) {
    %c0_i32 = arith.constant 0 : i32
    %c0_i32_0 = arith.constant 0 : i32
    return %arg0, %c0_i32 : i32, i32
  }
  func.func @transform_1(%arg0: i32) -> (i32, i32) {
    %c0_i32 = arith.constant 0 : i32
    %c0_i32_0 = arith.constant 0 : i32
    %c0_i32_1 = arith.constant 0 : i32
    return %c0_i32, %c0_i32_0 : i32, i32
  }
  func.func @transform_2(%arg0: i32) -> (i32, i32) {
    %c0_i32 = arith.constant 0 : i32
    %c0_i32_0 = arith.constant 0 : i32
    %c0_i32_1 = arith.constant 0 : i32
    return %c0_i32, %c0_i32_0 : i32, i32
  }
  func.func @transform_3(%arg0: i32) -> (i32, i32) {
    %c0_i32 = arith.constant 0 : i32
    %c0_i32_0 = arith.constant 0 : i32
    return %arg0, %c0_i32 : i32, i32
  }
}

</mosaic_0001>

<llo_original>
// kernel: actor_forward.1
$region0: #{actor_forward.1}
  #allocation0 [shape = 'u32[]', space=smem, size = 0x4, offset = 0x4, fixed_abs, tag = 'smem constant byte address 0x4 - core index']
  #allocation1 [shape = 'u32[72,128]{1,0:T(1,128)}', space=vmem, size = 0x9000, scoped, tag = 'internal scratch']
  %s0 = inlined_call_operand.vmem [shape: bf16[16,128], index: 0, kind: input, shape index: {}]
  %s1 = inlined_call_operand.hbm [shape: bf16[512,128], index: 1, kind: input, shape index: {}]
  %s2 = inlined_call_operand.vmem [shape: f32[4,128], index: 2, kind: input, shape index: {}]
  %s3 = inlined_call_operand.vmem [shape: bf16[16,5], index: 3, kind: output, shape index: {}]
  %s4 = sld [smem:[#allocation0]]
  $region26: #{actor_forward.1} parent=0
    _
  %s6 = ssub.s32 1, %s4
  %s7 = scalar_select 0, %s6, %s4
  $region1: #{actor_forward.1} parent=0
    #allocation2 [shape = 'u8[131072]{0}', space=vmem, size = 0x20000, scoped, tag = 'input window, operand 1, single buffered']
    #allocation3 [shape = 's32[1]{0}', space=sflag, size = 0x4, scoped, tag = 'scoped memory for actor_forward.1']
    %8 = vsyncpa [#allocation3], 0
    // Predicated region
    $region2: #{actor_forward.1} parent=1 // pred_check
      _
    $region3: #{actor_forward.1} parent=1 // pred_check_branch
      %10 = sbr.rel (0) target = $region5
    $region4: #{actor_forward.1} parent=1 // pred_region
      _
    $region5: #{actor_forward.1} parent=1 // pred_fallthru
      _
    // Predicated region
    $region6: #{actor_forward.1} parent=1 // pred_check
      _
    $region7: #{actor_forward.1} parent=1 // pred_check_branch
      %12 = sbr.rel (0) target = $region9
    $region8: #{actor_forward.1} parent=1 // pred_region
      %14 = vsyncadd [#allocation3], 0
      %s15 = sshll.u32 %s1, 4
      %s16 = int_to_ptr.hbm [resolvable:$true] %s15
      %s17 = sshll.u32 [#allocation2], 4
      %s18 = int_to_ptr.vmem [resolvable:$true] %s17
      %23 = dma.hbm_to_vmem [thread:$0]  %s16, 4096, %s18, [#allocation3], 64, 64, 4
    $region9: #{actor_forward.1} parent=1 // pred_fallthru
      _
    // Predicated region
    $region10: #{actor_forward.1} parent=1 // pred_check
      _
    $region11: #{actor_forward.1} parent=1 // pred_check_branch
      %25 = sbr.rel (0) target = $region13
    $region12: #{actor_forward.1} parent=1 // pred_region
      _
    $region13: #{actor_forward.1} parent=1 // pred_fallthru
      _
    // Predicated region
    $region14: #{actor_forward.1} parent=1 // pred_check
      _
    $region15: #{actor_forward.1} parent=1 // pred_check_branch
      %27 = sbr.rel (0) target = $region17
    $region16: #{actor_forward.1} parent=1 // pred_region
      %29 = dma.done [#allocation3], 4096
    $region17: #{actor_forward.1} parent=1 // pred_fallthru
      _
    %v30 = vld [vmem:[%s0] sm:$0xf]
    %v31 = vld [vmem:[%s0 + $0x4] sm:$0xf]
    %v32 = vld [vmem:[#allocation2] sm:$0xf]
    %v33 = vld [vmem:[#allocation2 + $0x4] sm:$0xf]
    %v34 = vld [vmem:[#allocation2 + $0x8] sm:$0xf]
    %v35 = vld [vmem:[#allocation2 + $0xc] sm:$0xf]
    %v36 = vld [vmem:[#allocation2 + $0x10] sm:$0xf]
    %v37 = vld [vmem:[#allocation2 + $0x14] sm:$0xf]
    %v38 = vld [vmem:[#allocation2 + $0x18] sm:$0xf]
    %v39 = vld [vmem:[#allocation2 + $0x1c] sm:$0xf]
    %v40 = vld [vmem:[#allocation2 + $0x20] sm:$0xf]
    %v41 = vld [vmem:[#allocation2 + $0x24] sm:$0xf]
    %v42 = vld [vmem:[#allocation2 + $0x28] sm:$0xf]
    %v43 = vld [vmem:[#allocation2 + $0x2c] sm:$0xf]
    %v44 = vld [vmem:[#allocation2 + $0x30] sm:$0xf]
    %v45 = vld [vmem:[#allocation2 + $0x34] sm:$0xf]
    %v46 = vld [vmem:[#allocation2 + $0x38] sm:$0xf]
    %v47 = vld [vmem:[#allocation2 + $0x3c] sm:$0xf]
    %v48 = vld [vmem:[%s2] sm:$0x1]
    %v49 = vperm.slane %v48, 0
    %v52 = vunpack.c.l.b16 %v30
    %v53 = vunpack.c.l.b16 %v31
    %v54 = vpack.c.b16 %v53, %v52
    %v72 = vunpack.c.l.b16 %v32
    %v73 = vunpack.c.l.b16 %v33
    %v74 = vunpack.c.l.b16 %v34
    %v75 = vunpack.c.l.b16 %v35
    %v76 = vunpack.c.l.b16 %v36
    %v77 = vunpack.c.l.b16 %v37
    %v78 = vunpack.c.l.b16 %v38
    %v79 = vunpack.c.l.b16 %v39
    %v80 = vunpack.c.l.b16 %v40
    %v81 = vunpack.c.l.b16 %v41
    %v82 = vunpack.c.l.b16 %v42
    %v83 = vunpack.c.l.b16 %v43
    %v84 = vunpack.c.l.b16 %v44
    %v85 = vunpack.c.l.b16 %v45
    %v86 = vunpack.c.l.b16 %v46
    %v87 = vunpack.c.l.b16 %v47
    %v88 = vpack.c.b16 %v73, %v72
    %v89 = vpack.c.b16 %v75, %v74
    %v90 = vpack.c.b16 %v77, %v76
    %v91 = vpack.c.b16 %v79, %v78
    %v92 = vpack.c.b16 %v81, %v80
    %v93 = vpack.c.b16 %v83, %v82
    %v94 = vpack.c.b16 %v85, %v84
    %v95 = vpack.c.b16 %v87, %v86
    %104 = vmatpush.bf16.msra.mxu0 %v95
    %105 = vmatpush.bf16.msra.mxu0 %v94
    %106 = vmatpush.bf16.msra.mxu0 %v93
    %107 = vmatpush.bf16.msra.mxu0 %v92
    %108 = vmatpush.bf16.msra.mxu0 %v91
    %109 = vmatpush.bf16.msra.mxu0 %v90
    %110 = vmatpush.bf16.msra.mxu0 %v89
    %111 = vmatpush.bf16.msra.mxu0 %v88
    %112 = vmatmul.bf16.gmra.mxu0 %v54
    %v113 = vpop.f32.mrf.mxu0
    %v114 = vadd.f32 %v49, %v113
    %v115 = vpop.f32.mrf.mxu0
    %v116 = vadd.f32 %v49, %v115
    %117 = vdwg.mxu0
    %v118 = vmax.f32 %v114, 0.0
    %v119 = vmax.f32 %v116, 0.0
    %v120 = vld [vmem:[#allocation2 + $0x40] sm:$0xf]
    %v121 = vld [vmem:[#allocation2 + $0x44] sm:$0xf]
    %v122 = vld [vmem:[#allocation2 + $0x48] sm:$0xf]
    %v123 = vld [vmem:[#allocation2 + $0x4c] sm:$0xf]
    %v124 = vld [vmem:[#allocation2 + $0x50] sm:$0xf]
    %v125 = vld [vmem:[#allocation2 + $0x54] sm:$0xf]
    %v126 = vld [vmem:[#allocation2 + $0x58] sm:$0xf]
    %v127 = vld [vmem:[#allocation2 + $0x5c] sm:$0xf]
    %v128 = vld [vmem:[#allocation2 + $0x60] sm:$0xf]
    %v129 = vld [vmem:[#allocation2 + $0x64] sm:$0xf]
    %v130 = vld [vmem:[#allocation2 + $0x68] sm:$0xf]
    %v131 = vld [vmem:[#allocation2 + $0x6c] sm:$0xf]
    %v132 = vld [vmem:[#allocation2 + $0x70] sm:$0xf]
    %v133 = vld [vmem:[#allocation2 + $0x74] sm:$0xf]
    %v134 = vld [vmem:[#allocation2 + $0x78] sm:$0xf]
    %v135 = vld [vmem:[#allocation2 + $0x7c] sm:$0xf]
    %v136 = vpack.c.bf16 %v119, %v118
    %v137 = vld [vmem:[%s2 + $0x1] sm:$0x1]
    %v138 = vperm.slane %v137, 0
    %v155 = vunpack.c.l.b16 %v120
    %v156 = vunpack.c.l.b16 %v121
    %v157 = vunpack.c.l.b16 %v122
    %v158 = vunpack.c.l.b16 %v123
    %v159 = vunpack.c.l.b16 %v124
    %v160 = vunpack.c.l.b16 %v125
    %v161 = vunpack.c.l.b16 %v126
    %v162 = vunpack.c.l.b16 %v127
    %v163 = vunpack.c.l.b16 %v128
    %v164 = vunpack.c.l.b16 %v129
    %v165 = vunpack.c.l.b16 %v130
    %v166 = vunpack.c.l.b16 %v131
    %v167 = vunpack.c.l.b16 %v132
    %v168 = vunpack.c.l.b16 %v133
    %v169 = vunpack.c.l.b16 %v134
    %v170 = vunpack.c.l.b16 %v135
    %v171 = vpack.c.b16 %v156, %v155
    %v172 = vpack.c.b16 %v158, %v157
    %v173 = vpack.c.b16 %v160, %v159
    %v174 = vpack.c.b16 %v162, %v161
    %v175 = vpack.c.b16 %v164, %v163
    %v176 = vpack.c.b16 %v166, %v165
    %v177 = vpack.c.b16 %v168, %v167
    %v178 = vpack.c.b16 %v170, %v169
    %187 = vmatpush.bf16.msra.mxu0 %v178
    %188 = vmatpush.bf16.msra.mxu0 %v177
    %189 = vmatpush.bf16.msra.mxu0 %v176
    %190 = vmatpush.bf16.msra.mxu0 %v175
    %191 = vmatpush.bf16.msra.mxu0 %v174
    %192 = vmatpush.bf16.msra.mxu0 %v173
    %193 = vmatpush.bf16.msra.mxu0 %v172
    %194 = vmatpush.bf16.msra.mxu0 %v171
    %195 = vmatmul.bf16.gmra.mxu0 %v136
    %v196 = vpop.f32.mrf.mxu0
    %v197 = vadd.f32 %v138, %v196
    %v198 = vpop.f32.mrf.mxu0
    %v199 = vadd.f32 %v138, %v198
    %200 = vdwg.mxu0
    %v201 = vmax.f32 %v197, 0.0
    %v202 = vmax.f32 %v199, 0.0
    %v203 = vld [vmem:[#allocation2 + $0x80] sm:$0xf]
    %v204 = vld [vmem:[#allocation2 + $0x84] sm:$0xf]
    %v205 = vld [vmem:[#allocation2 + $0x88] sm:$0xf]
    %v206 = vld [vmem:[#allocation2 + $0x8c] sm:$0xf]
    %v207 = vld [vmem:[#allocation2 + $0x90] sm:$0xf]
    %v208 = vld [vmem:[#allocation2 + $0x94] sm:$0xf]
    %v209 = vld [vmem:[#allocation2 + $0x98] sm:$0xf]
    %v210 = vld [vmem:[#allocation2 + $0x9c] sm:$0xf]
    %v211 = vld [vmem:[#allocation2 + $0xa0] sm:$0xf]
    %v212 = vld [vmem:[#allocation2 + $0xa4] sm:$0xf]
    %v213 = vld [vmem:[#allocation2 + $0xa8] sm:$0xf]
    %v214 = vld [vmem:[#allocation2 + $0xac] sm:$0xf]
    %v215 = vld [vmem:[#allocation2 + $0xb0] sm:$0xf]
    %v216 = vld [vmem:[#allocation2 + $0xb4] sm:$0xf]
    %v217 = vld [vmem:[#allocation2 + $0xb8] sm:$0xf]
    %v218 = vld [vmem:[#allocation2 + $0xbc] sm:$0xf]
    %v219 = vpack.c.bf16 %v202, %v201
    %v220 = vld [vmem:[%s2 + $0x2] sm:$0x1]
    %v221 = vperm.slane %v220, 0
    %v238 = vunpack.c.l.b16 %v203
    %v239 = vunpack.c.l.b16 %v204
    %v240 = vunpack.c.l.b16 %v205
    %v241 = vunpack.c.l.b16 %v206
    %v242 = vunpack.c.l.b16 %v207
    %v243 = vunpack.c.l.b16 %v208
    %v244 = vunpack.c.l.b16 %v209
    %v245 = vunpack.c.l.b16 %v210
    %v246 = vunpack.c.l.b16 %v211
    %v247 = vunpack.c.l.b16 %v212
    %v248 = vunpack.c.l.b16 %v213
    %v249 = vunpack.c.l.b16 %v214
    %v250 = vunpack.c.l.b16 %v215
    %v251 = vunpack.c.l.b16 %v216
    %v252 = vunpack.c.l.b16 %v217
    %v253 = vunpack.c.l.b16 %v218
    %v254 = vpack.c.b16 %v239, %v238
    %v255 = vpack.c.b16 %v241, %v240
    %v256 = vpack.c.b16 %v243, %v242
    %v257 = vpack.c.b16 %v245, %v244
    %v258 = vpack.c.b16 %v247, %v246
    %v259 = vpack.c.b16 %v249, %v248
    %v260 = vpack.c.b16 %v251, %v250
    %v261 = vpack.c.b16 %v253, %v252
    %270 = vmatpush.bf16.msra.mxu0 %v261
    %271 = vmatpush.bf16.msra.mxu0 %v260
    %272 = vmatpush.bf16.msra.mxu0 %v259
    %273 = vmatpush.bf16.msra.mxu0 %v258
    %274 = vmatpush.bf16.msra.mxu0 %v257
    %275 = vmatpush.bf16.msra.mxu0 %v256
    %276 = vmatpush.bf16.msra.mxu0 %v255
    %277 = vmatpush.bf16.msra.mxu0 %v254
    %278 = vmatmul.bf16.gmra.mxu0 %v219
    %v279 = vpop.f32.mrf.mxu0
    %v280 = vadd.f32 %v221, %v279
    %v281 = vpop.f32.mrf.mxu0
    %v282 = vadd.f32 %v221, %v281
    %283 = vdwg.mxu0
    %v284 = vmax.f32 %v280, 0.0
    %v285 = vmax.f32 %v282, 0.0
    %v286 = vld [vmem:[#allocation2 + $0xc0] sm:$0xf]
    %v287 = vld [vmem:[#allocation2 + $0xc4] sm:$0xf]
    %v288 = vld [vmem:[#allocation2 + $0xc8] sm:$0xf]
    %v289 = vld [vmem:[#allocation2 + $0xcc] sm:$0xf]
    %v290 = vld [vmem:[#allocation2 + $0xd0] sm:$0xf]
    %v291 = vld [vmem:[#allocation2 + $0xd4] sm:$0xf]
    %v292 = vld [vmem:[#allocation2 + $0xd8] sm:$0xf]
    %v293 = vld [vmem:[#allocation2 + $0xdc] sm:$0xf]
    %v294 = vld [vmem:[#allocation2 + $0xe0] sm:$0xf]
    %v295 = vld [vmem:[#allocation2 + $0xe4] sm:$0xf]
    %v296 = vld [vmem:[#allocation2 + $0xe8] sm:$0xf]
    %v297 = vld [vmem:[#allocation2 + $0xec] sm:$0xf]
    %v298 = vld [vmem:[#allocation2 + $0xf0] sm:$0xf]
    %v299 = vld [vmem:[#allocation2 + $0xf4] sm:$0xf]
    %v300 = vld [vmem:[#allocation2 + $0xf8] sm:$0xf]
    %v301 = vld [vmem:[#allocation2 + $0xfc] sm:$0xf]
    %v302 = vpack.c.bf16 %v285, %v284
    %v303 = vld [vmem:[%s2 + $0x3] sm:$0x1]
    %v304 = vperm.slane %v303, 0
    %v321 = vunpack.c.l.b16 %v286
    %v322 = vunpack.c.l.b16 %v287
    %v323 = vunpack.c.l.b16 %v288
    %v324 = vunpack.c.l.b16 %v289
    %v325 = vunpack.c.l.b16 %v290
    %v326 = vunpack.c.l.b16 %v291
    %v327 = vunpack.c.l.b16 %v292
    %v328 = vunpack.c.l.b16 %v293
    %v329 = vunpack.c.l.b16 %v294
    %v330 = vunpack.c.l.b16 %v295
    %v331 = vunpack.c.l.b16 %v296
    %v332 = vunpack.c.l.b16 %v297
    %v333 = vunpack.c.l.b16 %v298
    %v334 = vunpack.c.l.b16 %v299
    %v335 = vunpack.c.l.b16 %v300
    %v336 = vunpack.c.l.b16 %v301
    %v337 = vpack.c.b16 %v322, %v321
    %v338 = vpack.c.b16 %v324, %v323
    %v339 = vpack.c.b16 %v326, %v325
    %v340 = vpack.c.b16 %v328, %v327
    %v341 = vpack.c.b16 %v330, %v329
    %v342 = vpack.c.b16 %v332, %v331
    %v343 = vpack.c.b16 %v334, %v333
    %v344 = vpack.c.b16 %v336, %v335
    %353 = vmatpush.bf16.msra.mxu0 %v344
    %354 = vmatpush.bf16.msra.mxu0 %v343
    %355 = vmatpush.bf16.msra.mxu0 %v342
    %356 = vmatpush.bf16.msra.mxu0 %v341
    %357 = vmatpush.bf16.msra.mxu0 %v340
    %358 = vmatpush.bf16.msra.mxu0 %v339
    %359 = vmatpush.bf16.msra.mxu0 %v338
    %360 = vmatpush.bf16.msra.mxu0 %v337
    %361 = vmatmul.bf16.gmra.mxu0 %v302
    %v362 = vpop.f32.mrf.mxu0
    %v363 = vadd.f32 %v304, %v362
    %v364 = vpop.f32.mrf.mxu0
    %v365 = vadd.f32 %v304, %v364
    %366 = vdwg.mxu0
    %v367 = vtanh.pop %v363
    %v368 = vtanh.pop %v365
    %v369 = vpack.c.bf16 %v367, %v367
    %v370 = vpack.c.bf16 %v368, %v368
    %vm371 = vcmask 35840
    %372 = vst.msk [vmem:[%s3] sm:$0xf] %vm371, %v369
    %373 = vst.msk [vmem:[%s3 + $0x4] sm:$0xf] %vm371, %v370
    // Predicated region
    $region18: #{actor_forward.1} parent=1 // pred_check
      _
    $region19: #{actor_forward.1} parent=1 // pred_check_branch
      %375 = sbr.rel (0) target = $region21
    $region20: #{actor_forward.1} parent=1 // pred_region
      _
    $region21: #{actor_forward.1} parent=1 // pred_fallthru
      _
    // Predicated region
    $region22: #{actor_forward.1} parent=1 // pred_check
      _
    $region23: #{actor_forward.1} parent=1 // pred_check_branch
      %377 = sbr.rel (0) target = $region25
    $region24: #{actor_forward.1} parent=1 // pred_region
      _
    $region25: #{actor_forward.1} parent=1 // pred_fallthru
      _
    %378 = vsyncpa [#allocation3], 1

</llo_original>
